<compile_context>
chip_gen: v7x
topology: tpu7x:2x2x1
jax: 0.10.0
libtpu: 0.0.40
codegen_flags: <defaults>
</compile_context>

<pallas_src>
import jax
import jax.numpy as jnp
from jax.experimental import pallas as pl
from jax.experimental.pallas import tpu as pltpu


def _drop_path_kernel(x_ref, scale_ref, o_ref):
    # x_ref:     (tr, tf) tile of the row-major flattened input
    # scale_ref: (tr, 1)  per-row scale = mask / keep_prob, kept in float32
    # o_ref:     (tr, tf) output tile
    x = x_ref[...]
    s = scale_ref[...]  # f32, broadcasts along the lane (feature) axis
    o_ref[...] = (x.astype(jnp.float32) * s).astype(o_ref.dtype)


def _round_up(x: int, m: int) -> int:
    return (x + m - 1) // m * m


def _hw_params():
    """Generation-aware block / VMEM budgets.

    Defaults are safe on v7x (64 MiB physical VMEM per TensorCore); when the
    hardware query reports a 128 MiB-VMEM chip (v5e / v6e) we grow both.
    """
    target_block_bytes = 8 << 20
    vmem_limit_bytes = 48 << 20
    try:
        cap = int(getattr(pltpu.get_tpu_info(), "vmem_capacity_bytes", 0))
        if cap >= (100 << 20):  # v5e / v6e class: 128 MiB physical VMEM
            target_block_bytes = 12 << 20
            vmem_limit_bytes = 64 << 20
    except Exception:
        pass  # keep the v7x-safe defaults
    return target_block_bytes, vmem_limit_bytes


def _choose_row_split(batch: int, feat: int, itemsize: int) -> int:
    """Pick k | feat so (batch * k) rows fill the vreg sublanes (8 for f32,
    16 for bf16) while keeping feat // k a multiple of 128 (lane-dense output
    stores).  If no such split exists, prefer k == 1 over manufacturing a
    non-128-multiple last dim (masked vst path is several times slower)."""
    target_rows = max(8, 32 // max(itemsize, 1))
    k = 1
    while batch * k < target_rows:
        grew = False
        for p in (2, 3, 5, 7):
            kk = k * p
            if feat % kk == 0 and (feat // kk) % 128 == 0 and (feat // kk) >= 128:
                k = kk
                grew = True
                break
        if not grew:
            break
    return k


def _choose_tiles(R: int, Fk: int, itemsize: int, target_block_bytes: int):
    """Block shape (tr, tf): lane-dense tf, then re-grow tr to fill the byte
    budget; nudge to an even, >= 2 step count for megacore (v7x) on non-tiny
    inputs.  Every path keeps tr*tf*itemsize bounded by the budget."""
    # --- feature (lane) tile: multiple of 128, or the full extent ---
    lane_budget = max(128, (target_block_bytes // (8 * itemsize)) // 128 * 128)
    if Fk <= 256 or Fk <= lane_budget:
        tf = Fk  # whole feature extent per block (full-extent dim is legal)
    else:
        tf = min(lane_budget, (Fk // 128) * 128)

    # --- row (sublane) tile: re-grow to fill the block budget ---
    tr = max(8, (target_block_bytes // (tf * itemsize)) // 8 * 8)
    if tr >= R:
        tr = R  # block dim equal to the full extent is always legal

    # --- megacore (v7x): make the parallel step count even and >= 2 ---
    if R * Fk * itemsize > (1 << 20):
        n_r, n_f = pl.cdiv(R, tr), pl.cdiv(Fk, tf)
        total = n_r * n_f
        if total % 2 == 1 and total <= 8:
            # 1) Clean lane-dense halving of the feature extent.
            if tf == Fk and Fk % 256 == 0:
                return tr, Fk // 2
            # 2) Split rows (multiples of 8; partial last block via cdiv).
            if tr > 8 and R > 8:
                new_tr = max(8, _round_up(pl.cdiv(R, n_r + 1), 8))
                if (pl.cdiv(R, new_tr) * n_f) % 2 == 0:
                    return new_tr, tf
            # 3) Generic lane-dense feature split (partial last block masked).
            if tf > 128 and Fk > 128:
                new_tf = max(128, _round_up(pl.cdiv(Fk, n_f + 1), 128))
                if (pl.cdiv(Fk, new_tf) * n_r) % 2 == 0:
                    return tr, new_tf
    return tr, tf


def _drop_path_elementwise(x2d, scale_rows):
    """x2d: (R, Fk) flattened input; scale_rows: (R, 1) per-row f32 scale."""
    R, Fk = x2d.shape
    itemsize = jnp.dtype(x2d.dtype).itemsize
    target_block_bytes, vmem_limit_bytes = _hw_params()

    tr, tf = _choose_tiles(R, Fk, itemsize, target_block_bytes)
    n_r, n_f = pl.cdiv(R, tr), pl.cdiv(Fk, tf)

    return pl.pallas_call(
        _drop_path_kernel,
        out_shape=jax.ShapeDtypeStruct((R, Fk), x2d.dtype),
        grid_spec=pltpu.PrefetchScalarGridSpec(
            num_scalar_prefetch=0,
            grid=(n_r, n_f),
            in_specs=[
                pl.BlockSpec((tr, tf), lambda i, j: (i, j)),
                # Scale block index is constant along the feature axis, so it
                # stays VMEM-resident instead of being re-DMA'd per feature step.
                pl.BlockSpec((tr, 1), lambda i, j: (i, 0)),
            ],
            out_specs=pl.BlockSpec((tr, tf), lambda i, j: (i, j)),
        ),
        compiler_params=pltpu.CompilerParams(
            dimension_semantics=("parallel", "parallel"),
            vmem_limit_bytes=vmem_limit_bytes,
        ),
    )(x2d, scale_rows)


def drop_path(x, key, drop_prob: float = 0.1, training: bool = False):
    """JAX/Pallas equivalent of the PyTorch DropPath.forward.

    x: array of any rank with batch as the leading axis (e.g. NCHW / NCZHW).
    key: PRNG key used only in training mode (replaces torch.rand).
    """
    if drop_prob == 0.0 or not training:
        return x

    keep_prob = 1.0 - drop_prob
    B = x.shape[0]
    F = int(x.size) // B

    # Per-sample binary mask: floor(keep_prob + U[0,1)) in {0, 1}; keep f32.
    u = jax.random.uniform(key, (B, 1), dtype=jnp.float32)
    scale = jnp.floor(keep_prob + u) / jnp.float32(keep_prob)  # (B, 1) f32

    # Fill vreg sublanes: view each sample's features as k rows of F // k
    # (contiguous reshape = free; rows never cross sample boundaries).
    k = _choose_row_split(B, F, jnp.dtype(x.dtype).itemsize)
    x2d = x.reshape(B * k, F // k)
    scale_rows = jnp.repeat(scale, k, axis=0)  # (B*k, 1), tiny

    out2d = _drop_path_elementwise(x2d, scale_rows)
    return out2d.reshape(x.shape)


class DropPath:
    """Minimal module-like wrapper mirroring the PyTorch class."""

    def __init__(self, drop_prob: float = 0.1):
        self.drop_prob = drop_prob
        self.training = True

    def __call__(self, x, key):
        return drop_path(x, key, self.drop_prob, self.training)


if __name__ == "__main__":
    key = jax.random.PRNGKey(0)
    k_x, k_drop, k_x2, k_drop2 = jax.random.split(key, 4)

    # --- Small NCHW input consistent with the module's usage ---
    B, C, H, W = 2, 4, 16, 16
    x = jax.random.normal(k_x, (B, C, H, W), dtype=jnp.float32)

    module = DropPath(drop_prob=0.1)

    # Training mode: kernel applies the per-sample mask / keep_prob scaling.
    module.training = True
    y_train = module(x, k_drop)
    jax.block_until_ready(y_train)

    # Reference check (pure JAX) for the training path.
    keep_prob = 1.0 - module.drop_prob
    u = jax.random.uniform(k_drop, (B, 1), dtype=jnp.float32)
    mask = jnp.floor(keep_prob + u).reshape(B, 1, 1, 1)
    y_ref = x / keep_prob * mask
    assert jnp.allclose(y_train, y_ref, atol=1e-6, rtol=1e-6)

    # Eval mode: identity (matches PyTorch `not training` branch).
    module.training = False
    y_eval = module(x, k_drop)
    jax.block_until_ready(y_eval)
    assert jnp.array_equal(y_eval, x)

    # --- Odd-shaped input: exercises the non-128-multiple / k == 1 fallback ---
    B2, C2, H2, W2 = 3, 5, 17, 19
    x2 = jax.random.normal(k_x2, (B2, C2, H2, W2), dtype=jnp.float32)
    module.training = True
    y2 = module(x2, k_drop2)
    jax.block_until_ready(y2)
    u2 = jax.random.uniform(k_drop2, (B2, 1), dtype=jnp.float32)
    mask2 = jnp.floor(keep_prob + u2).reshape(B2, 1, 1, 1)
    y2_ref = x2 / keep_prob * mask2
    assert jnp.allclose(y2, y2_ref, atol=1e-6, rtol=1e-6)

    print("KERNEL_OK")
</pallas_src>

<mosaic_0001>
module attributes {stable_mosaic.version = 11 : i64} {
  func.func @_drop_path_kernel(%arg0: i32, %arg1: i32, %arg2: memref<8x256xf32, #tpu.memory_space<vmem>>, %arg3: memref<8x1xf32, #tpu.memory_space<vmem>>, %arg4: memref<8x256xf32, #tpu.memory_space<vmem>>) attributes {dimension_semantics = [#tpu.dimension_semantics<parallel>, #tpu.dimension_semantics<parallel>], iteration_bounds = array<i64: 1, 1>, scalar_prefetch = 0 : i64, scratch_operands = 0 : i64, tpu.core_type = #tpu.core_type<tc>, window_params = [{transform_indices = @transform_0, window_bounds = array<i64: 8, 256>}, {transform_indices = @transform_1, window_bounds = array<i64: 8, 1>}, {transform_indices = @transform_2, window_bounds = array<i64: 8, 256>}]} {
    %c0 = arith.constant 0 : index
    %c0_0 = arith.constant 0 : index
    %0 = vector.load %arg2[%c0, %c0_0] : memref<8x256xf32, #tpu.memory_space<vmem>>, vector<8x256xf32>
    %c0_1 = arith.constant 0 : index
    %c0_2 = arith.constant 0 : index
    %1 = vector.load %arg3[%c0_1, %c0_2] : memref<8x1xf32, #tpu.memory_space<vmem>>, vector<8x1xf32>
    %2 = vector.broadcast %1 : vector<8x1xf32> to vector<8x256xf32>
    %3 = arith.mulf %0, %2 : vector<8x256xf32>
    %c0_3 = arith.constant 0 : index
    %c0_4 = arith.constant 0 : index
    %4 = vector.load %arg4[%c0_3, %c0_4] : memref<8x256xf32, #tpu.memory_space<vmem>>, vector<8x256xf32>
    tpu.vector_store %arg4[%c0_3, %c0_4], %3 {strides = array<i32>} : memref<8x256xf32, #tpu.memory_space<vmem>>, vector<8x256xf32>,
    return
  }
  func.func @transform_0(%arg0: i32, %arg1: i32) -> (i32, i32) {
    %c0_i32 = arith.constant 0 : i32
    return %arg0, %arg1 : i32, i32
  }
  func.func @transform_1(%arg0: i32, %arg1: i32) -> (i32, i32) {
    %c0_i32 = arith.constant 0 : i32
    %c0_i32_0 = arith.constant 0 : i32
    return %arg0, %c0_i32 : i32, i32
  }
  func.func @transform_2(%arg0: i32, %arg1: i32) -> (i32, i32) {
    %c0_i32 = arith.constant 0 : i32
    return %arg0, %arg1 : i32, i32
  }
}

</mosaic_0001>

<llo_original>
// kernel: tpu_custom_call.1
$region0: #{tpu_custom_call.1}
  #allocation0 [shape = 'u32[]', space=smem, size = 0x4, offset = 0x4, fixed_abs, tag = 'smem constant byte address 0x4 - core index']
  #allocation1 [shape = 'u32[144,128]{1,0:T(1,128)}', space=vmem, size = 0x12000, scoped, tag = 'internal scratch']
  %s0 = inlined_call_operand.hbm [shape: f32[8,256], index: 0, kind: input, shape index: {}]
  %s1 = inlined_call_operand.vmem [shape: f32[8,1], index: 1, kind: input, shape index: {}]
  %s2 = inlined_call_operand.hbm [shape: f32[8,256], index: 2, kind: output, shape index: {}]
  %s3 = sld [smem:[#allocation0]]
  $region22: #{tpu_custom_call.1} parent=0
    _
  %s5 = ssub.s32 1, %s3
  %s6 = scalar_select 0, %s5, %s3
  $region1: #{tpu_custom_call.1} parent=0
    #allocation2 [shape = 'u8[8192]{0}', space=vmem, size = 0x2000, scoped, tag = 'input window, operand 0, single buffered']
    #allocation3 [shape = 's32[1]{0}', space=sflag, size = 0x4, scoped, tag = 'scoped memory for tpu_custom_call.1']
    #allocation4 [shape = 's32[1]{0}', space=sflag, size = 0x4, scoped, tag = 'scoped memory for tpu_custom_call.1']
    #allocation5 [shape = 'u8[8192]{0}', space=vmem, size = 0x2000, scoped, tag = 'output window, operand 0, single buffered']
    %7 = vsyncpa [#allocation3], 0
    %8 = vsyncpa [#allocation4], 0
    // Predicated region
    $region2: #{tpu_custom_call.1} parent=1 // pred_check
      _
    $region3: #{tpu_custom_call.1} parent=1 // pred_check_branch
      %10 = sbr.rel (0) target = $region5
    $region4: #{tpu_custom_call.1} parent=1 // pred_region
      %s12 = ssub.s32 256, 256
      %13 = vsyncadd [#allocation3], %s12
      %s15 = sshll.u32 [#allocation2], 4
      %s16 = int_to_ptr.vmem [resolvable:$true] %s15
      %18 = dma.hbm_to_vmem [thread:$0]  %s0, 256, %s16, [#allocation3]
    $region5: #{tpu_custom_call.1} parent=1 // pred_fallthru
      _
    // Predicated region
    $region6: #{tpu_custom_call.1} parent=1 // pred_check
      _
    $region7: #{tpu_custom_call.1} parent=1 // pred_check_branch
      %20 = sbr.rel (0) target = $region9
    $region8: #{tpu_custom_call.1} parent=1 // pred_region
      _
    $region9: #{tpu_custom_call.1} parent=1 // pred_fallthru
      _
    // Predicated region
    $region10: #{tpu_custom_call.1} parent=1 // pred_check
      _
    $region11: #{tpu_custom_call.1} parent=1 // pred_check_branch
      %22 = sbr.rel (0) target = $region13
    $region12: #{tpu_custom_call.1} parent=1 // pred_region
      %23 = dma.done [#allocation3], 256
    $region13: #{tpu_custom_call.1} parent=1 // pred_fallthru
      _
    %v24 = vld [vmem:[#allocation2] sm:$0xff]
    %v25 = vld [vmem:[#allocation2 + $0x8] sm:$0xff]
    %v26 = vld [vmem:[%s1] sm:$0xff]
    %28 = vset.pattern.permute.xlu0 0
    %29 = vperm.xlu0 %28, %v26
    %v30 = vpop.permute.xlu0 %29
    %v32 = vmul.f32 %v24, %v30
    %v33 = vmul.f32 %v25, %v30
    %34 = vst [vmem:[#allocation5] sm:$0xff] %v32
    %35 = vst [vmem:[#allocation5 + $0x8] sm:$0xff] %v33
    // Predicated region
    $region14: #{tpu_custom_call.1} parent=1 // pred_check
      _
    $region15: #{tpu_custom_call.1} parent=1 // pred_check_branch
      %37 = sbr.rel (0) target = $region17
    $region16: #{tpu_custom_call.1} parent=1 // pred_region
      %s39 = ssub.s32 256, 256
      %40 = vsyncadd [#allocation4], %s39
      %s42 = sshll.u32 [#allocation5], 4
      %s43 = int_to_ptr.vmem [resolvable:$true] %s42
      %45 = dma.vmem_to_hbm [thread:$0]  %s43, 256, %s2, [#allocation4]
    $region17: #{tpu_custom_call.1} parent=1 // pred_fallthru
      _
    // Predicated region
    $region18: #{tpu_custom_call.1} parent=1 // pred_check
      _
    $region19: #{tpu_custom_call.1} parent=1 // pred_check_branch
      %47 = sbr.rel (0) target = $region21
    $region20: #{tpu_custom_call.1} parent=1 // pred_region
      %48 = dma.done [#allocation4], 256
    $region21: #{tpu_custom_call.1} parent=1 // pred_fallthru
      _
    %49 = vsyncpa [#allocation3], 1
    %50 = vsyncpa [#allocation4], 1

</llo_original>
